<compile_context>
chip_gen: v7x
topology: tpu7x:2x2x1
jax: 0.10.0
libtpu: 0.0.40
codegen_flags: <defaults>
</compile_context>

<pallas_src>
import functools

import jax
import jax.numpy as jnp
from jax import lax
from jax.experimental import pallas as pl
from jax.experimental.pallas import tpu as pltpu

SUBLANE = 8  # f32 sublane tile


def _round_up(v, m):
    return (v + m - 1) // m * m


# ----------------------------------------------------------------------------
# Fused residual-block kernel (one batch-chunk per grid step)
# ----------------------------------------------------------------------------

def _make_resblock_kernel(H, W, c_in_pad, c_out_pad, chunk_l, has_downsample):
    tap_list = [(dy, dx) for dy in range(3) for dx in range(3)]  # (dy, dx)-major

    def kernel(x_ref, mask_ref, w1_ref, b1_ref, w2_ref, b2_ref, *rest):
        if has_downsample:
            wds_ref, bds_ref, o_ref = rest
        else:
            (o_ref,) = rest

        masks = mask_ref[...]  # (9, chunk_l) f32 0/1, constant block (stays in VMEM)

        def im2col(a):
            # a: (Cp, chunk_l) f32 -> (9*Cp, chunk_l) bf16 with implicit zero pad.
            pieces = []
            for k, (dy, dx) in enumerate(tap_list):
                off = (dy - 1) * W + (dx - 1)  # flat in-image offset of this tap
                if off == 0:
                    pieces.append(a)  # center tap: no shift, no mask
                else:
                    shifted = pltpu.roll(a, shift=(-off) % chunk_l, axis=1)
                    pieces.append(shifted * masks[k:k + 1, :])
            # 8-aligned f32 concat (no sublane relayout), then ONE bulk bf16 cast.
            return jnp.concatenate(pieces, axis=0).astype(jnp.bfloat16)

        x = x_ref[...]  # (c_in_pad, chunk_l) f32

        # conv1 (3x3, pad=1) + folded bn1 + relu  -- single K=9*c_in_pad MXU push
        p1 = im2col(x)                                              # (9*Cin_p, L)
        y1 = jnp.dot(w1_ref[...], p1, preferred_element_type=jnp.float32)
        y1 = jnp.maximum(y1 + b1_ref[...], 0.0)                     # (Cout_p, L) f32

        # conv2 (3x3, pad=1) + folded bn2
        p2 = im2col(y1)                                             # (9*Cout_p, L)
        y2 = jnp.dot(w2_ref[...], p2, preferred_element_type=jnp.float32)
        y2 = y2 + b2_ref[...]

        # residual branch
        if has_downsample:
            # Reuse the bf16 center-tap rows of p1 (== bf16(x)); no second cast.
            x_bf = p1[4 * c_in_pad:5 * c_in_pad, :]
            ident = jnp.dot(wds_ref[...], x_bf,
                            preferred_element_type=jnp.float32) + bds_ref[...]
        else:
            ident = x

        o_ref[...] = jnp.maximum(y2 + ident, 0.0)  # lane-dense unmasked store

    return kernel


def _tap_masks(H, W, imgs_per_step):
    """(9, imgs_per_step*H*W) f32 0/1 masks, per-image periodic (no cross-image leak)."""
    L = H * W
    idx = jnp.arange(L, dtype=jnp.int32)
    hh, ww = idx // W, idx % W
    rows = []
    for dy in range(3):
        for dx in range(3):
            rows.append((hh + dy - 1 >= 0) & (hh + dy - 1 < H) &
                        (ww + dx - 1 >= 0) & (ww + dx - 1 < W))
    m = jnp.stack(rows, 0).astype(jnp.float32)   # (9, L)
    return jnp.tile(m, (1, imgs_per_step))       # (9, imgs_per_step*L)


# ----------------------------------------------------------------------------
# Wrapper
# ----------------------------------------------------------------------------

@functools.partial(jax.jit, static_argnames=("c_out", "imgs_per_step"))
def basic_residual_block(x_nchw, params, c_out, imgs_per_step=None):
    """x_nchw: (N, C_in, H, W) f32; params: padded, BN-folded kernel weights."""
    has_downsample = 'w_ds' in params
    N, c_in, H, W = x_nchw.shape
    L = H * W
    c_out_pad, k1 = params['w1'].shape
    c_in_pad = k1 // 9

    if imgs_per_step is None:
        imgs_per_step = N            # single grid step (best on v5e/v6e for small N)
    assert N % imgs_per_step == 0    # set imgs_per_step=N//2 on v7x to use both TCs
    n_steps = N // imgs_per_step
    chunk_l = imgs_per_step * L

    # Channel-major layout with batch folded onto the lane axis, channels padded
    # to the f32 sublane multiple (zero rows).
    x_cl = jnp.transpose(x_nchw.reshape(N, c_in, L).astype(jnp.float32),
                         (1, 0, 2)).reshape(c_in, N * L)
    x_cl = jnp.zeros((c_in_pad, N * L), jnp.float32).at[:c_in].set(x_cl)

    masks = _tap_masks(H, W, imgs_per_step)

    kernel = _make_resblock_kernel(H, W, c_in_pad, c_out_pad, chunk_l, has_downsample)

    in_specs = [
        pl.BlockSpec((c_in_pad, chunk_l), lambda s: (0, s)),
        pl.BlockSpec((9, chunk_l), lambda s: (0, 0)),
        pl.BlockSpec((c_out_pad, 9 * c_in_pad), lambda s: (0, 0)),
        pl.BlockSpec((c_out_pad, 1), lambda s: (0, 0)),
        pl.BlockSpec((c_out_pad, 9 * c_out_pad), lambda s: (0, 0)),
        pl.BlockSpec((c_out_pad, 1), lambda s: (0, 0)),
    ]
    args = [x_cl, masks, params['w1'], params['b1'], params['w2'], params['b2']]
    if has_downsample:
        in_specs += [pl.BlockSpec((c_out_pad, c_in_pad), lambda s: (0, 0)),
                     pl.BlockSpec((c_out_pad, 1), lambda s: (0, 0))]
        args += [params['w_ds'], params['b_ds']]

    y_cl = pl.pallas_call(
        kernel,
        out_shape=jax.ShapeDtypeStruct((c_out_pad, N * L), jnp.float32),
        grid=(n_steps,),
        in_specs=in_specs,
        out_specs=pl.BlockSpec((c_out_pad, chunk_l), lambda s: (0, s)),
        compiler_params=pltpu.CompilerParams(
            dimension_semantics=("parallel",)),
    )(*args)

    y = y_cl[:c_out].reshape(c_out, N, L)
    return jnp.transpose(y, (1, 0, 2)).reshape(N, c_out, H, W)


# ----------------------------------------------------------------------------
# Parameter construction (synthetic, deterministic) + eval-mode BN folding
# ----------------------------------------------------------------------------

def _bn_stats(key, c):
    k1, k2, k3, k4 = jax.random.split(key, 4)
    gamma = 1.0 + 0.1 * jax.random.normal(k1, (c,), jnp.float32)
    beta = 0.1 * jax.random.normal(k2, (c,), jnp.float32)
    mean = 0.1 * jax.random.normal(k3, (c,), jnp.float32)
    var = 0.5 + jax.nn.softplus(jax.random.normal(k4, (c,), jnp.float32))
    return gamma, beta, mean, var


def _fold_bn(w_oihw, gamma, beta, mean, var, eps=1e-5):
    scale = gamma / jnp.sqrt(var + eps)
    w_f = w_oihw * scale[:, None, None, None]
    b_f = beta - mean * scale
    return w_f.astype(jnp.float32), b_f.astype(jnp.float32)


def _pack3x3(w_f, c_in_pad, c_out_pad):
    # (Cout, Cin, 3, 3) -> (Cout_pad, 9*Cin_pad) bf16, (dy, dx, cin)-major,
    # zero-padded channels (matches kernel im2col piece order).
    c_out, c_in = w_f.shape[:2]
    w = jnp.zeros((c_out_pad, c_in_pad, 3, 3), jnp.float32).at[:c_out, :c_in].set(w_f)
    return jnp.transpose(w, (0, 2, 3, 1)).reshape(c_out_pad, 9 * c_in_pad).astype(jnp.bfloat16)


def _pad_bias(b, c_out_pad):
    return jnp.zeros((c_out_pad, 1), jnp.float32).at[:b.shape[0], 0].set(b)


def init_params(key, in_channel, out_channel, eps=1e-5):
    keys = jax.random.split(key, 6)
    has_downsample = in_channel != out_channel
    c_in_pad = _round_up(in_channel, SUBLANE)
    c_out_pad = _round_up(out_channel, SUBLANE)

    w1_raw = 0.2 * jax.random.normal(keys[0], (out_channel, in_channel, 3, 3), jnp.float32)
    w1_f, b1_f = _fold_bn(w1_raw, *_bn_stats(keys[1], out_channel), eps=eps)
    w2_raw = 0.2 * jax.random.normal(keys[2], (out_channel, out_channel, 3, 3), jnp.float32)
    w2_f, b2_f = _fold_bn(w2_raw, *_bn_stats(keys[3], out_channel), eps=eps)

    params = {'w1': _pack3x3(w1_f, c_in_pad, c_out_pad), 'b1': _pad_bias(b1_f, c_out_pad),
              'w2': _pack3x3(w2_f, c_out_pad, c_out_pad), 'b2': _pad_bias(b2_f, c_out_pad)}
    ref = {'w1': w1_f, 'b1': b1_f, 'w2': w2_f, 'b2': b2_f}

    if has_downsample:
        wds_raw = 0.2 * jax.random.normal(keys[4], (out_channel, in_channel, 1, 1), jnp.float32)
        wds_f, bds_f = _fold_bn(wds_raw, *_bn_stats(keys[5], out_channel), eps=eps)
        wds = jnp.zeros((c_out_pad, c_in_pad), jnp.float32)
        wds = wds.at[:out_channel, :in_channel].set(wds_f[:, :, 0, 0])
        params['w_ds'] = wds.astype(jnp.bfloat16)
        params['b_ds'] = _pad_bias(bds_f, c_out_pad)
        ref['w_ds'] = wds_f
        ref['b_ds'] = bds_f
    return params, ref


def ref_forward(x, ref):
    """Pure-JAX f32 reference for correctness checking."""
    def conv(a, w):
        return lax.conv_general_dilated(a, w, window_strides=(1, 1), padding='SAME',
                                        dimension_numbers=('NCHW', 'OIHW', 'NCHW'))
    y = jnp.maximum(conv(x, ref['w1']) + ref['b1'].reshape(1, -1, 1, 1), 0.0)
    y = conv(y, ref['w2']) + ref['b2'].reshape(1, -1, 1, 1)
    if 'w_ds' in ref:
        ident = conv(x, ref['w_ds']) + ref['b_ds'].reshape(1, -1, 1, 1)
    else:
        ident = x
    return jnp.maximum(y + ident, 0.0)


# ----------------------------------------------------------------------------
# Main
# ----------------------------------------------------------------------------

if __name__ == "__main__":
    key = jax.random.PRNGKey(0)
    k_x, k_p1, k_p2 = jax.random.split(key, 3)

    N, C, H, W = 2, 4, 16, 16
    x = jax.random.normal(k_x, (N, C, H, W), jnp.float32)

    # Tolerances tightened from 1e-1: bf16 operands with K<=72 f32 accumulation.
    ATOL, RTOL = 5e-2, 2e-2

    # Case 1: default constructor (stride=1, no downsample, C_in == C_out).
    params1, ref1 = init_params(k_p1, C, C)
    out1 = jax.block_until_ready(basic_residual_block(x, params1, c_out=C))
    assert out1.shape == (N, C, H, W) and out1.dtype == jnp.float32
    assert bool(jnp.allclose(out1, ref_forward(x, ref1), atol=ATOL, rtol=RTOL))

    # Case 2: channel-changing block with 1x1 conv + BN downsample branch.
    C_out2 = 8
    params2, ref2 = init_params(k_p2, C, C_out2)
    out2 = jax.block_until_ready(basic_residual_block(x, params2, c_out=C_out2))
    assert out2.shape == (N, C_out2, H, W) and out2.dtype == jnp.float32
    assert bool(jnp.allclose(out2, ref_forward(x, ref2), atol=ATOL, rtol=RTOL))

    print("KERNEL_OK")
</pallas_src>

<mosaic_0001>
module attributes {stable_mosaic.version = 11 : i64} {
  func.func @kernel(%arg0: i32, %arg1: memref<8x512xf32, #tpu.memory_space<vmem>>, %arg2: memref<9x512xf32, #tpu.memory_space<vmem>>, %arg3: memref<8x72xbf16, #tpu.memory_space<vmem>>, %arg4: memref<8x1xf32, #tpu.memory_space<vmem>>, %arg5: memref<8x72xbf16, #tpu.memory_space<vmem>>, %arg6: memref<8x1xf32, #tpu.memory_space<vmem>>, %arg7: memref<8x512xf32, #tpu.memory_space<vmem>>) attributes {dimension_semantics = [#tpu.dimension_semantics<parallel>], iteration_bounds = array<i64: 1>, scalar_prefetch = 0 : i64, scratch_operands = 0 : i64, tpu.core_type = #tpu.core_type<tc>, window_params = [{transform_indices = @transform_0, window_bounds = array<i64: 8, 512>}, {pipeline_mode = #tpu.pipeline_mode<synchronous>, transform_indices = @transform_1, window_bounds = array<i64: 9, 512>}, {pipeline_mode = #tpu.pipeline_mode<synchronous>, transform_indices = @transform_2, window_bounds = array<i64: 8, 72>}, {pipeline_mode = #tpu.pipeline_mode<synchronous>, transform_indices = @transform_3, window_bounds = array<i64: 8, 1>}, {pipeline_mode = #tpu.pipeline_mode<synchronous>, transform_indices = @transform_4, window_bounds = array<i64: 8, 72>}, {pipeline_mode = #tpu.pipeline_mode<synchronous>, transform_indices = @transform_5, window_bounds = array<i64: 8, 1>}, {transform_indices = @transform_6, window_bounds = array<i64: 8, 512>}]} {
    %c0 = arith.constant 0 : index
    %c0_0 = arith.constant 0 : index
    %0 = vector.load %arg2[%c0, %c0_0] : memref<9x512xf32, #tpu.memory_space<vmem>>, vector<9x512xf32>
    %c0_1 = arith.constant 0 : index
    %c0_2 = arith.constant 0 : index
    %1 = vector.load %arg1[%c0_1, %c0_2] : memref<8x512xf32, #tpu.memory_space<vmem>>, vector<8x512xf32>
    %c17_i32 = arith.constant 17 : i32
    %2 = tpu.dynamic_rotate %1 by %c17_i32 dim 1 : vector<8x512xf32>, i32 -> vector<8x512xf32>
    %3 = vector.extract_strided_slice %0 {offsets = [0, 0], sizes = [1, 512], strides = [1, 1]} : vector<9x512xf32> to vector<1x512xf32>
    %4 = vector.broadcast %3 : vector<1x512xf32> to vector<8x512xf32>
    %5 = arith.mulf %2, %4 : vector<8x512xf32>
    %c16_i32 = arith.constant 16 : i32
    %6 = tpu.dynamic_rotate %1 by %c16_i32 dim 1 : vector<8x512xf32>, i32 -> vector<8x512xf32>
    %7 = vector.extract_strided_slice %0 {offsets = [1, 0], sizes = [1, 512], strides = [1, 1]} : vector<9x512xf32> to vector<1x512xf32>
    %8 = vector.broadcast %7 : vector<1x512xf32> to vector<8x512xf32>
    %9 = arith.mulf %6, %8 : vector<8x512xf32>
    %c15_i32 = arith.constant 15 : i32
    %10 = tpu.dynamic_rotate %1 by %c15_i32 dim 1 : vector<8x512xf32>, i32 -> vector<8x512xf32>
    %11 = vector.extract_strided_slice %0 {offsets = [2, 0], sizes = [1, 512], strides = [1, 1]} : vector<9x512xf32> to vector<1x512xf32>
    %12 = vector.broadcast %11 : vector<1x512xf32> to vector<8x512xf32>
    %13 = arith.mulf %10, %12 : vector<8x512xf32>
    %c1_i32 = arith.constant 1 : i32
    %14 = tpu.dynamic_rotate %1 by %c1_i32 dim 1 : vector<8x512xf32>, i32 -> vector<8x512xf32>
    %15 = vector.extract_strided_slice %0 {offsets = [3, 0], sizes = [1, 512], strides = [1, 1]} : vector<9x512xf32> to vector<1x512xf32>
    %16 = vector.broadcast %15 : vector<1x512xf32> to vector<8x512xf32>
    %17 = arith.mulf %14, %16 : vector<8x512xf32>
    %c511_i32 = arith.constant 511 : i32
    %18 = tpu.dynamic_rotate %1 by %c511_i32 dim 1 : vector<8x512xf32>, i32 -> vector<8x512xf32>
    %19 = vector.extract_strided_slice %0 {offsets = [5, 0], sizes = [1, 512], strides = [1, 1]} : vector<9x512xf32> to vector<1x512xf32>
    %20 = vector.broadcast %19 : vector<1x512xf32> to vector<8x512xf32>
    %21 = arith.mulf %18, %20 : vector<8x512xf32>
    %c497_i32 = arith.constant 497 : i32
    %22 = tpu.dynamic_rotate %1 by %c497_i32 dim 1 : vector<8x512xf32>, i32 -> vector<8x512xf32>
    %23 = vector.extract_strided_slice %0 {offsets = [6, 0], sizes = [1, 512], strides = [1, 1]} : vector<9x512xf32> to vector<1x512xf32>
    %24 = vector.broadcast %23 : vector<1x512xf32> to vector<8x512xf32>
    %25 = arith.mulf %22, %24 : vector<8x512xf32>
    %c496_i32 = arith.constant 496 : i32
    %26 = tpu.dynamic_rotate %1 by %c496_i32 dim 1 : vector<8x512xf32>, i32 -> vector<8x512xf32>
    %27 = vector.extract_strided_slice %0 {offsets = [7, 0], sizes = [1, 512], strides = [1, 1]} : vector<9x512xf32> to vector<1x512xf32>
    %28 = vector.broadcast %27 : vector<1x512xf32> to vector<8x512xf32>
    %29 = arith.mulf %26, %28 : vector<8x512xf32>
    %c495_i32 = arith.constant 495 : i32
    %30 = tpu.dynamic_rotate %1 by %c495_i32 dim 1 : vector<8x512xf32>, i32 -> vector<8x512xf32>
    %31 = vector.extract_strided_slice %0 {offsets = [8, 0], sizes = [1, 512], strides = [1, 1]} : vector<9x512xf32> to vector<1x512xf32>
    %32 = vector.broadcast %31 : vector<1x512xf32> to vector<8x512xf32>
    %33 = arith.mulf %30, %32 : vector<8x512xf32>
    %34 = tpu.concatenate %5, %9, %13, %17, %1, %21, %25, %29, %33 in 0 : vector<8x512xf32>, vector<8x512xf32>, vector<8x512xf32>, vector<8x512xf32>, vector<8x512xf32>, vector<8x512xf32>, vector<8x512xf32>, vector<8x512xf32>, vector<8x512xf32> -> vector<72x512xf32>
    %35 = arith.truncf %34 : vector<72x512xf32> to vector<72x512xbf16>
    %c0_3 = arith.constant 0 : index
    %c0_4 = arith.constant 0 : index
    %36 = vector.load %arg3[%c0_3, %c0_4] : memref<8x72xbf16, #tpu.memory_space<vmem>>, vector<8x72xbf16>
    %cst = arith.constant dense<0.000000e+00> : vector<8x512xf32>
    %37 = tpu.matmul %36, %35, %cst {dimension_numbers = #tpu.dot_dimension_numbers<[1], [0], [0], [1], [0, 0, 1, 1], [], []>} : vector<8x72xbf16>, vector<72x512xbf16>, vector<8x512xf32> -> vector<8x512xf32>
    %c0_5 = arith.constant 0 : index
    %c0_6 = arith.constant 0 : index
    %38 = vector.load %arg4[%c0_5, %c0_6] : memref<8x1xf32, #tpu.memory_space<vmem>>, vector<8x1xf32>
    %39 = vector.broadcast %38 : vector<8x1xf32> to vector<8x512xf32>
    %40 = arith.addf %37, %39 : vector<8x512xf32>
    %cst_7 = arith.constant 0.000000e+00 : f32
    %41 = vector.broadcast %cst_7 : f32 to vector<8x512xf32>
    %42 = arith.maximumf %40, %41 : vector<8x512xf32>
    %c17_i32_8 = arith.constant 17 : i32
    %43 = tpu.dynamic_rotate %42 by %c17_i32_8 dim 1 : vector<8x512xf32>, i32 -> vector<8x512xf32>
    %44 = vector.extract_strided_slice %0 {offsets = [0, 0], sizes = [1, 512], strides = [1, 1]} : vector<9x512xf32> to vector<1x512xf32>
    %45 = vector.broadcast %44 : vector<1x512xf32> to vector<8x512xf32>
    %46 = arith.mulf %43, %45 : vector<8x512xf32>
    %c16_i32_9 = arith.constant 16 : i32
    %47 = tpu.dynamic_rotate %42 by %c16_i32_9 dim 1 : vector<8x512xf32>, i32 -> vector<8x512xf32>
    %48 = vector.extract_strided_slice %0 {offsets = [1, 0], sizes = [1, 512], strides = [1, 1]} : vector<9x512xf32> to vector<1x512xf32>
    %49 = vector.broadcast %48 : vector<1x512xf32> to vector<8x512xf32>
    %50 = arith.mulf %47, %49 : vector<8x512xf32>
    %c15_i32_10 = arith.constant 15 : i32
    %51 = tpu.dynamic_rotate %42 by %c15_i32_10 dim 1 : vector<8x512xf32>, i32 -> vector<8x512xf32>
    %52 = vector.extract_strided_slice %0 {offsets = [2, 0], sizes = [1, 512], strides = [1, 1]} : vector<9x512xf32> to vector<1x512xf32>
    %53 = vector.broadcast %52 : vector<1x512xf32> to vector<8x512xf32>
    %54 = arith.mulf %51, %53 : vector<8x512xf32>
    %c1_i32_11 = arith.constant 1 : i32
    %55 = tpu.dynamic_rotate %42 by %c1_i32_11 dim 1 : vector<8x512xf32>, i32 -> vector<8x512xf32>
    %56 = vector.extract_strided_slice %0 {offsets = [3, 0], sizes = [1, 512], strides = [1, 1]} : vector<9x512xf32> to vector<1x512xf32>
    %57 = vector.broadcast %56 : vector<1x512xf32> to vector<8x512xf32>
    %58 = arith.mulf %55, %57 : vector<8x512xf32>
    %c511_i32_12 = arith.constant 511 : i32
    %59 = tpu.dynamic_rotate %42 by %c511_i32_12 dim 1 : vector<8x512xf32>, i32 -> vector<8x512xf32>
    %60 = vector.extract_strided_slice %0 {offsets = [5, 0], sizes = [1, 512], strides = [1, 1]} : vector<9x512xf32> to vector<1x512xf32>
    %61 = vector.broadcast %60 : vector<1x512xf32> to vector<8x512xf32>
    %62 = arith.mulf %59, %61 : vector<8x512xf32>
    %c497_i32_13 = arith.constant 497 : i32
    %63 = tpu.dynamic_rotate %42 by %c497_i32_13 dim 1 : vector<8x512xf32>, i32 -> vector<8x512xf32>
    %64 = vector.extract_strided_slice %0 {offsets = [6, 0], sizes = [1, 512], strides = [1, 1]} : vector<9x512xf32> to vector<1x512xf32>
    %65 = vector.broadcast %64 : vector<1x512xf32> to vector<8x512xf32>
    %66 = arith.mulf %63, %65 : vector<8x512xf32>
    %c496_i32_14 = arith.constant 496 : i32
    %67 = tpu.dynamic_rotate %42 by %c496_i32_14 dim 1 : vector<8x512xf32>, i32 -> vector<8x512xf32>
    %68 = vector.extract_strided_slice %0 {offsets = [7, 0], sizes = [1, 512], strides = [1, 1]} : vector<9x512xf32> to vector<1x512xf32>
    %69 = vector.broadcast %68 : vector<1x512xf32> to vector<8x512xf32>
    %70 = arith.mulf %67, %69 : vector<8x512xf32>
    %c495_i32_15 = arith.constant 495 : i32
    %71 = tpu.dynamic_rotate %42 by %c495_i32_15 dim 1 : vector<8x512xf32>, i32 -> vector<8x512xf32>
    %72 = vector.extract_strided_slice %0 {offsets = [8, 0], sizes = [1, 512], strides = [1, 1]} : vector<9x512xf32> to vector<1x512xf32>
    %73 = vector.broadcast %72 : vector<1x512xf32> to vector<8x512xf32>
    %74 = arith.mulf %71, %73 : vector<8x512xf32>
    %75 = tpu.concatenate %46, %50, %54, %58, %42, %62, %66, %70, %74 in 0 : vector<8x512xf32>, vector<8x512xf32>, vector<8x512xf32>, vector<8x512xf32>, vector<8x512xf32>, vector<8x512xf32>, vector<8x512xf32>, vector<8x512xf32>, vector<8x512xf32> -> vector<72x512xf32>
    %76 = arith.truncf %75 : vector<72x512xf32> to vector<72x512xbf16>
    %c0_16 = arith.constant 0 : index
    %c0_17 = arith.constant 0 : index
    %77 = vector.load %arg5[%c0_16, %c0_17] : memref<8x72xbf16, #tpu.memory_space<vmem>>, vector<8x72xbf16>
    %cst_18 = arith.constant dense<0.000000e+00> : vector<8x512xf32>
    %78 = tpu.matmul %77, %76, %cst_18 {dimension_numbers = #tpu.dot_dimension_numbers<[1], [0], [0], [1], [0, 0, 1, 1], [], []>} : vector<8x72xbf16>, vector<72x512xbf16>, vector<8x512xf32> -> vector<8x512xf32>
    %c0_19 = arith.constant 0 : index
    %c0_20 = arith.constant 0 : index
    %79 = vector.load %arg6[%c0_19, %c0_20] : memref<8x1xf32, #tpu.memory_space<vmem>>, vector<8x1xf32>
    %80 = vector.broadcast %79 : vector<8x1xf32> to vector<8x512xf32>
    %81 = arith.addf %78, %80 : vector<8x512xf32>
    %82 = arith.addf %81, %1 : vector<8x512xf32>
    %cst_21 = arith.constant 0.000000e+00 : f32
    %83 = vector.broadcast %cst_21 : f32 to vector<8x512xf32>
    %84 = arith.maximumf %82, %83 : vector<8x512xf32>
    %c0_22 = arith.constant 0 : index
    %c0_23 = arith.constant 0 : index
    %85 = vector.load %arg7[%c0_22, %c0_23] : memref<8x512xf32, #tpu.memory_space<vmem>>, vector<8x512xf32>
    tpu.vector_store %arg7[%c0_22, %c0_23], %84 {strides = array<i32>} : memref<8x512xf32, #tpu.memory_space<vmem>>, vector<8x512xf32>,
    return
  }
  func.func @transform_0(%arg0: i32) -> (i32, i32) {
    %c0_i32 = arith.constant 0 : i32
    %c0_i32_0 = arith.constant 0 : i32
    return %c0_i32, %arg0 : i32, i32
  }
  func.func @transform_1(%arg0: i32) -> (i32, i32) {
    %c0_i32 = arith.constant 0 : i32
    %c0_i32_0 = arith.constant 0 : i32
    %c0_i32_1 = arith.constant 0 : i32
    return %c0_i32, %c0_i32_0 : i32, i32
  }
  func.func @transform_2(%arg0: i32) -> (i32, i32) {
    %c0_i32 = arith.constant 0 : i32
    %c0_i32_0 = arith.constant 0 : i32
    %c0_i32_1 = arith.constant 0 : i32
    return %c0_i32, %c0_i32_0 : i32, i32
  }
  func.func @transform_3(%arg0: i32) -> (i32, i32) {
    %c0_i32 = arith.constant 0 : i32
    %c0_i32_0 = arith.constant 0 : i32
    %c0_i32_1 = arith.constant 0 : i32
    return %c0_i32, %c0_i32_0 : i32, i32
  }
  func.func @transform_4(%arg0: i32) -> (i32, i32) {
    %c0_i32 = arith.constant 0 : i32
    %c0_i32_0 = arith.constant 0 : i32
    %c0_i32_1 = arith.constant 0 : i32
    return %c0_i32, %c0_i32_0 : i32, i32
  }
  func.func @transform_5(%arg0: i32) -> (i32, i32) {
    %c0_i32 = arith.constant 0 : i32
    %c0_i32_0 = arith.constant 0 : i32
    %c0_i32_1 = arith.constant 0 : i32
    return %c0_i32, %c0_i32_0 : i32, i32
  }
  func.func @transform_6(%arg0: i32) -> (i32, i32) {
    %c0_i32 = arith.constant 0 : i32
    %c0_i32_0 = arith.constant 0 : i32
    return %c0_i32, %arg0 : i32, i32
  }
}

</mosaic_0001>

<llo_original>
// kernel: basic_residual_block.1
$region0: #{basic_residual_block.1}
  #allocation0 [shape = 'u32[]', space=smem, size = 0x4, offset = 0x4, fixed_abs, tag = 'smem constant byte address 0x4 - core index']
  #allocation1 [shape = 'u32[144,128]{1,0:T(1,128)}', space=vmem, size = 0x12000, scoped, tag = 'internal scratch']
  %s0 = inlined_call_operand.vmem [shape: f32[8,512], index: 0, kind: input, shape index: {}]
  %s1 = inlined_call_operand.vmem [shape: f32[9,512], index: 1, kind: input, shape index: {}]
  %s2 = inlined_call_operand.vmem [shape: bf16[8,72], index: 2, kind: input, shape index: {}]
  %s3 = inlined_call_operand.vmem [shape: f32[8,1], index: 3, kind: input, shape index: {}]
  %s4 = inlined_call_operand.vmem [shape: bf16[8,72], index: 4, kind: input, shape index: {}]
  %s5 = inlined_call_operand.vmem [shape: f32[8,1], index: 5, kind: input, shape index: {}]
  %s6 = inlined_call_operand.vmem [shape: f32[8,512], index: 6, kind: output, shape index: {}]
  %s7 = sld [smem:[#allocation0]]
  $region34: #{basic_residual_block.1} parent=0
    _
  %s9 = ssub.s32 1, %s7
  %s10 = scalar_select 0, %s9, %s7
  // Predicated region
  $region2: #{basic_residual_block.1} parent=0 // pred_check
    _
  $region3: #{basic_residual_block.1} parent=0 // pred_check_branch
    %12 = sbr.rel (0) target = $region5
  $region4: #{basic_residual_block.1} parent=0 // pred_region
    _
  $region5: #{basic_residual_block.1} parent=0 // pred_fallthru
    _
  // Predicated region
  $region6: #{basic_residual_block.1} parent=0 // pred_check
    _
  $region7: #{basic_residual_block.1} parent=0 // pred_check_branch
    %14 = sbr.rel (0) target = $region9
  $region8: #{basic_residual_block.1} parent=0 // pred_region
    _
  $region9: #{basic_residual_block.1} parent=0 // pred_fallthru
    _
  // Predicated region
  $region10: #{basic_residual_block.1} parent=0 // pred_check
    _
  $region11: #{basic_residual_block.1} parent=0 // pred_check_branch
    %16 = sbr.rel (0) target = $region13
  $region12: #{basic_residual_block.1} parent=0 // pred_region
    _
  $region13: #{basic_residual_block.1} parent=0 // pred_fallthru
    _
  // Predicated region
  $region14: #{basic_residual_block.1} parent=0 // pred_check
    _
  $region15: #{basic_residual_block.1} parent=0 // pred_check_branch
    %18 = sbr.rel (0) target = $region17
  $region16: #{basic_residual_block.1} parent=0 // pred_region
    _
  $region17: #{basic_residual_block.1} parent=0 // pred_fallthru
    _
  // Predicated region
  $region18: #{basic_residual_block.1} parent=0 // pred_check
    _
  $region19: #{basic_residual_block.1} parent=0 // pred_check_branch
    %20 = sbr.rel (0) target = $region21
  $region20: #{basic_residual_block.1} parent=0 // pred_region
    _
  $region21: #{basic_residual_block.1} parent=0 // pred_fallthru
    _
  // Predicated region
  $region22: #{basic_residual_block.1} parent=0 // pred_check
    _
  $region23: #{basic_residual_block.1} parent=0 // pred_check_branch
    %22 = sbr.rel (0) target = $region25
  $region24: #{basic_residual_block.1} parent=0 // pred_region
    _
  $region25: #{basic_residual_block.1} parent=0 // pred_fallthru
    _
  %v24 = vld [vmem:[%s1] sm:$0xff]
  %v25 = vld [vmem:[%s1 + $0x8] sm:$0xff]
  %v26 = vld [vmem:[%s1 + $0x10] sm:$0xff]
  %v27 = vld [vmem:[%s1 + $0x18] sm:$0xff]
  %v28 = vld [vmem:[%s1 + $0x20] sm:$0x1]
  %v29 = vld [vmem:[%s1 + $0x28] sm:$0x1]
  %v30 = vld [vmem:[%s1 + $0x30] sm:$0x1]
  %v31 = vld [vmem:[%s1 + $0x38] sm:$0x1]
  %v32 = vld [vmem:[%s0] sm:$0xff]
  %v33 = vld [vmem:[%s0 + $0x8] sm:$0xff]
  %v34 = vld [vmem:[%s0 + $0x10] sm:$0xff]
  %v35 = vld [vmem:[%s0 + $0x18] sm:$0xff]
  %36 = vrot.lane.b32.xlu0 %v32, 17
  %v37 = vpop.permute.xlu0 %36
  %38 = vrot.lane.b32.xlu0 %v33, 17
  %v39 = vpop.permute.xlu0 %38
  %40 = vrot.lane.b32.xlu0 %v34, 17
  %v41 = vpop.permute.xlu0 %40
  %42 = vrot.lane.b32.xlu0 %v35, 17
  %v43 = vpop.permute.xlu0 %42
  %v44 = vlaneseq
  %v45 = vand.u32 %v44, 127
  %vm46 = vcmp.lt.s32.totalorder %v45, 17
  %v47 = vsel %vm46, %v41, %v43
  %v48 = vsel %vm46, %v39, %v41
  %v49 = vsel %vm46, %v37, %v39
  %v50 = vsel %vm46, %v43, %v37
  %v51 = vlaneseq
  %v52 = vshrl.u32 %v51, 7
  %v53 = vsub.s32 0, %v52
  %v54 = vrot.slane %v24, %v53
  %v55 = vlaneseq
  %v56 = vshrl.u32 %v55, 7
  %v57 = vsub.s32 0, %v56
  %v58 = vrot.slane %v25, %v57
  %v59 = vlaneseq
  %v60 = vshrl.u32 %v59, 7
  %v61 = vsub.s32 0, %v60
  %v62 = vrot.slane %v26, %v61
  %v63 = vlaneseq
  %v64 = vshrl.u32 %v63, 7
  %v65 = vsub.s32 0, %v64
  %v66 = vrot.slane %v27, %v65
  %v67 = vmul.f32 %v50, %v54
  %v68 = vmul.f32 %v49, %v58
  %v69 = vmul.f32 %v48, %v62
  %v70 = vmul.f32 %v47, %v66
  %71 = vrot.lane.b32.xlu0 %v32, 16
  %v72 = vpop.permute.xlu0 %71
  %73 = vrot.lane.b32.xlu0 %v33, 16
  %v74 = vpop.permute.xlu0 %73
  %75 = vrot.lane.b32.xlu0 %v34, 16
  %v76 = vpop.permute.xlu0 %75
  %77 = vrot.lane.b32.xlu0 %v35, 16
  %v78 = vpop.permute.xlu0 %77
  %vm79 = vcmp.lt.s32.totalorder %v45, 16
  %v80 = vsel %vm79, %v76, %v78
  %v81 = vsel %vm79, %v74, %v76
  %v82 = vsel %vm79, %v72, %v74
  %v83 = vsel %vm79, %v78, %v72
  %v84 = vlaneseq
  %v85 = vshrl.u32 %v84, 7
  %v86 = vsub.s32 1, %v85
  %v87 = vrot.slane %v24, %v86
  %v88 = vlaneseq
  %v89 = vshrl.u32 %v88, 7
  %v90 = vsub.s32 1, %v89
  %v91 = vrot.slane %v25, %v90
  %v92 = vlaneseq
  %v93 = vshrl.u32 %v92, 7
  %v94 = vsub.s32 1, %v93
  %v95 = vrot.slane %v26, %v94
  %v96 = vlaneseq
  %v97 = vshrl.u32 %v96, 7
  %v98 = vsub.s32 1, %v97
  %v99 = vrot.slane %v27, %v98
  %v100 = vmul.f32 %v83, %v87
  %v101 = vmul.f32 %v82, %v91
  %v102 = vmul.f32 %v81, %v95
  %v103 = vmul.f32 %v80, %v99
  %104 = vrot.lane.b32.xlu0 %v32, 15
  %v105 = vpop.permute.xlu0 %104
  %106 = vrot.lane.b32.xlu0 %v33, 15
  %v107 = vpop.permute.xlu0 %106
  %108 = vrot.lane.b32.xlu0 %v34, 15
  %v109 = vpop.permute.xlu0 %108
  %110 = vrot.lane.b32.xlu0 %v35, 15
  %v111 = vpop.permute.xlu0 %110
  %vm112 = vcmp.lt.s32.totalorder %v45, 15
  %v113 = vsel %vm112, %v109, %v111
  %v114 = vsel %vm112, %v107, %v109
  %v115 = vsel %vm112, %v105, %v107
  %v116 = vsel %vm112, %v111, %v105
  %v117 = vlaneseq
  %v118 = vshrl.u32 %v117, 7
  %v119 = vsub.s32 2, %v118
  %v120 = vrot.slane %v24, %v119
  %v121 = vlaneseq
  %v122 = vshrl.u32 %v121, 7
  %v123 = vsub.s32 2, %v122
  %v124 = vrot.slane %v25, %v123
  %v125 = vlaneseq
  %v126 = vshrl.u32 %v125, 7
  %v127 = vsub.s32 2, %v126
  %v128 = vrot.slane %v26, %v127
  %v129 = vlaneseq
  %v130 = vshrl.u32 %v129, 7
  %v131 = vsub.s32 2, %v130
  %v132 = vrot.slane %v27, %v131
  %v133 = vmul.f32 %v116, %v120
  %v134 = vmul.f32 %v115, %v124
  %v135 = vmul.f32 %v114, %v128
  %v136 = vmul.f32 %v113, %v132
  %137 = vrot.lane.b32.xlu0 %v32, 1
  %v138 = vpop.permute.xlu0 %137
  %139 = vrot.lane.b32.xlu0 %v33, 1
  %v140 = vpop.permute.xlu0 %139
  %141 = vrot.lane.b32.xlu0 %v34, 1
  %v142 = vpop.permute.xlu0 %141
  %143 = vrot.lane.b32.xlu0 %v35, 1
  %v144 = vpop.permute.xlu0 %143
  %vm145 = vcmp.lt.s32.totalorder %v45, 1
  %v146 = vsel %vm145, %v142, %v144
  %v147 = vsel %vm145, %v140, %v142
  %v148 = vsel %vm145, %v138, %v140
  %v149 = vsel %vm145, %v144, %v138
  %v150 = vlaneseq
  %v151 = vshrl.u32 %v150, 7
  %v152 = vsub.s32 3, %v151
  %v153 = vrot.slane %v24, %v152
  %v154 = vlaneseq
  %v155 = vshrl.u32 %v154, 7
  %v156 = vsub.s32 3, %v155
  %v157 = vrot.slane %v25, %v156
  %v158 = vlaneseq
  %v159 = vshrl.u32 %v158, 7
  %v160 = vsub.s32 3, %v159
  %v161 = vrot.slane %v26, %v160
  %v162 = vlaneseq
  %v163 = vshrl.u32 %v162, 7
  %v164 = vsub.s32 3, %v163
  %v165 = vrot.slane %v27, %v164
  %v166 = vmul.f32 %v149, %v153
  %v167 = vmul.f32 %v148, %v157
  %v168 = vmul.f32 %v147, %v161
  %v169 = vmul.f32 %v146, %v165
  %170 = vrot.lane.b32.xlu0 %v32, 127
  %v171 = vpop.permute.xlu0 %170
  %172 = vrot.lane.b32.xlu0 %v33, 127
  %v173 = vpop.permute.xlu0 %172
  %174 = vrot.lane.b32.xlu0 %v34, 127
  %v175 = vpop.permute.xlu0 %174
  %176 = vrot.lane.b32.xlu0 %v35, 127
  %v177 = vpop.permute.xlu0 %176
  %vm178 = vcmp.lt.s32.totalorder %v45, 127
  %v179 = vsel %vm178, %v175, %v177
  %v180 = vsel %vm178, %v173, %v175
  %v181 = vsel %vm178, %v171, %v173
  %v182 = vsel %vm178, %v177, %v171
  %v183 = vlaneseq
  %v184 = vshrl.u32 %v183, 7
  %v185 = vsub.s32 5, %v184
  %v186 = vrot.slane %v24, %v185
  %v187 = vlaneseq
  %v188 = vshrl.u32 %v187, 7
  %v189 = vsub.s32 5, %v188
  %v190 = vrot.slane %v25, %v189
  %v191 = vlaneseq
  %v192 = vshrl.u32 %v191, 7
  %v193 = vsub.s32 5, %v192
  %v194 = vrot.slane %v26, %v193
  %v195 = vlaneseq
  %v196 = vshrl.u32 %v195, 7
  %v197 = vsub.s32 5, %v196
  %v198 = vrot.slane %v27, %v197
  %v199 = vmul.f32 %v181, %v186
  %v200 = vmul.f32 %v180, %v190
  %v201 = vmul.f32 %v179, %v194
  %v202 = vmul.f32 %v182, %v198
  %203 = vrot.lane.b32.xlu0 %v32, 113
  %v204 = vpop.permute.xlu0 %203
  %205 = vrot.lane.b32.xlu0 %v33, 113
  %v206 = vpop.permute.xlu0 %205
  %207 = vrot.lane.b32.xlu0 %v34, 113
  %v208 = vpop.permute.xlu0 %207
  %209 = vrot.lane.b32.xlu0 %v35, 113
  %v210 = vpop.permute.xlu0 %209
  %vm211 = vcmp.lt.s32.totalorder %v45, 113
  %v212 = vsel %vm211, %v208, %v210
  %v213 = vsel %vm211, %v206, %v208
  %v214 = vsel %vm211, %v204, %v206
  %v215 = vsel %vm211, %v210, %v204
  %v216 = vlaneseq
  %v217 = vshrl.u32 %v216, 7
  %v218 = vsub.s32 6, %v217
  %v219 = vrot.slane %v24, %v218
  %v220 = vlaneseq
  %v221 = vshrl.u32 %v220, 7
  %v222 = vsub.s32 6, %v221
  %v223 = vrot.slane %v25, %v222
  %v224 = vlaneseq
  %v225 = vshrl.u32 %v224, 7
  %v226 = vsub.s32 6, %v225
  %v227 = vrot.slane %v26, %v226
  %v228 = vlaneseq
  %v229 = vshrl.u32 %v228, 7
  %v230 = vsub.s32 6, %v229
  %v231 = vrot.slane %v27, %v230
  %v232 = vmul.f32 %v214, %v219
  %v233 = vmul.f32 %v213, %v223
  %v234 = vmul.f32 %v212, %v227
  %v235 = vmul.f32 %v215, %v231
  %236 = vrot.lane.b32.xlu0 %v32, 112
  %v237 = vpop.permute.xlu0 %236
  %238 = vrot.lane.b32.xlu0 %v33, 112
  %v239 = vpop.permute.xlu0 %238
  %240 = vrot.lane.b32.xlu0 %v34, 112
  %v241 = vpop.permute.xlu0 %240
  %242 = vrot.lane.b32.xlu0 %v35, 112
  %v243 = vpop.permute.xlu0 %242
  %vm244 = vcmp.lt.s32.totalorder %v45, 112
  %v245 = vsel %vm244, %v241, %v243
  %v246 = vsel %vm244, %v239, %v241
  %v247 = vsel %vm244, %v237, %v239
  %v248 = vsel %vm244, %v243, %v237
  %v249 = vlaneseq
  %v250 = vshrl.u32 %v249, 7
  %v251 = vsub.s32 7, %v250
  %v252 = vrot.slane %v24, %v251
  %v253 = vlaneseq
  %v254 = vshrl.u32 %v253, 7
  %v255 = vsub.s32 7, %v254
  %v256 = vrot.slane %v25, %v255
  %v257 = vlaneseq
  %v258 = vshrl.u32 %v257, 7
  %v259 = vsub.s32 7, %v258
  %v260 = vrot.slane %v26, %v259
  %v261 = vlaneseq
  %v262 = vshrl.u32 %v261, 7
  %v263 = vsub.s32 7, %v262
  %v264 = vrot.slane %v27, %v263
  %v265 = vmul.f32 %v247, %v252
  %v266 = vmul.f32 %v246, %v256
  %v267 = vmul.f32 %v245, %v260
  %v268 = vmul.f32 %v248, %v264
  %269 = vrot.lane.b32.xlu0 %v32, 111
  %v270 = vpop.permute.xlu0 %269
  %271 = vrot.lane.b32.xlu0 %v33, 111
  %v272 = vpop.permute.xlu0 %271
  %273 = vrot.lane.b32.xlu0 %v34, 111
  %v274 = vpop.permute.xlu0 %273
  %275 = vrot.lane.b32.xlu0 %v35, 111
  %v276 = vpop.permute.xlu0 %275
  %vm277 = vcmp.lt.s32.totalorder %v45, 111
  %v278 = vsel %vm277, %v274, %v276
  %v279 = vsel %vm277, %v272, %v274
  %v280 = vsel %vm277, %v270, %v272
  %v281 = vsel %vm277, %v276, %v270
  %v282 = vlaneseq
  %v283 = vshrl.u32 %v282, 7
  %v284 = vsub.s32 0, %v283
  %v285 = vrot.slane %v28, %v284
  %v286 = vlaneseq
  %v287 = vshrl.u32 %v286, 7
  %v288 = vsub.s32 0, %v287
  %v289 = vrot.slane %v29, %v288
  %v290 = vlaneseq
  %v291 = vshrl.u32 %v290, 7
  %v292 = vsub.s32 0, %v291
  %v293 = vrot.slane %v30, %v292
  %v294 = vlaneseq
  %v295 = vshrl.u32 %v294, 7
  %v296 = vsub.s32 0, %v295
  %v297 = vrot.slane %v31, %v296
  %v298 = vmul.f32 %v280, %v285
  %v299 = vmul.f32 %v279, %v289
  %v300 = vmul.f32 %v278, %v293
  %v301 = vmul.f32 %v281, %v297
  %v302 = vpack.c.bf16 %v100, %v67
  %v303 = vpack.c.bf16 %v101, %v68
  %v304 = vpack.c.bf16 %v102, %v69
  %v305 = vpack.c.bf16 %v103, %v70
  %v306 = vpack.c.bf16 %v166, %v133
  %v307 = vpack.c.bf16 %v167, %v134
  %v308 = vpack.c.bf16 %v168, %v135
  %v309 = vpack.c.bf16 %v169, %v136
  %v310 = vpack.c.bf16 %v199, %v32
  %v311 = vpack.c.bf16 %v200, %v33
  %v312 = vpack.c.bf16 %v201, %v34
  %v313 = vpack.c.bf16 %v202, %v35
  %v314 = vpack.c.bf16 %v265, %v232
  %v315 = vpack.c.bf16 %v266, %v233
  %v316 = vpack.c.bf16 %v267, %v234
  %v317 = vpack.c.bf16 %v268, %v235
  %v318 = vpack.c.bf16 %v298, %v298
  %v319 = vpack.c.bf16 %v299, %v299
  %v320 = vpack.c.bf16 %v300, %v300
  %v321 = vpack.c.bf16 %v301, %v301
  %v322 = vld [vmem:[%s2] sm:$0xf]
  %v323 = vld [vmem:[%s3] sm:$0xff]
  %325 = vset.pattern.permute.xlu0 0
  %326 = vperm.xlu0 %325, %v323
  %v327 = vpop.permute.xlu0 %326
  %vm329 = vcmask 588800
  %v331 = vsel %vm329, %v322, 0
  %vm333 = vcmask 1043456
  %v335 = vsel %vm333, %v318, 0
  %v338 = vsel %vm333, %v319, 0
  %v341 = vsel %vm333, %v320, 0
  %v344 = vsel %vm333, %v321, 0
  %346 = vmatprep.subr.bf16.mxu0 %v303
  %347 = vmatpush1.bf16.msra.mxu0 %v302
  %348 = vmatprep.subr.bf16.mxu0 %v307
  %349 = vmatpush1.bf16.msra.mxu0 %v306
  %350 = vmatprep.subr.bf16.mxu0 %v311
  %351 = vmatpush1.bf16.msra.mxu0 %v310
  %352 = vmatprep.subr.bf16.mxu0 %v315
  %353 = vmatpush1.bf16.msra.mxu0 %v314
  %354 = vmatprep.subr.bf16.mxu0 %v338
  %355 = vmatpush1.bf16.msra.mxu0 %v335
  %356 = vmatprep.subr.bf16.mxu0 0
  %357 = vmatpush1.bf16.msra.mxu0 0
  %358 = vmatprep.subr.bf16.mxu0 0
  %359 = vmatpush1.bf16.msra.mxu0 0
  %360 = vmatprep.subr.bf16.mxu0 0
  %361 = vmatpush1.bf16.msra.mxu0 0
  %362 = vmatprep.subr.bf16.mxu0 0
  %363 = vmatpush1.bf16.msra.mxu0 0
  %364 = vmatprep.subr.bf16.mxu0 0
  %365 = vmatpush1.bf16.msra.mxu0 0
  %366 = vmatprep.subr.bf16.mxu0 0
  %367 = vmatpush1.bf16.msra.mxu0 0
  %368 = vmatprep.subr.bf16.mxu0 0
  %369 = vmatpush1.bf16.msra.mxu0 0
  %370 = vmatprep.subr.bf16.mxu0 0
  %371 = vmatpush1.bf16.msra.mxu0 0
  %372 = vmatprep.subr.bf16.mxu0 0
  %373 = vmatpush1.bf16.msra.mxu0 0
  %374 = vmatprep.subr.bf16.mxu0 0
  %375 = vmatpush1.bf16.msra.mxu0 0
  %376 = vmatprep.subr.bf16.mxu0 0
  %377 = vmatpush1.bf16.msra.mxu0 0
  %378 = vmatprep.mubr.bf16.mxu0 0
  %379 = vmatmul.mubr.bf16.gmra.mrb[0].mxu0 %v331
  %v380 = vpop.f32.mrb[0].mxu0
  %v381 = vadd.f32 %v327, %v380
  %v382 = vpop.f32.mrb[0].mxu0
  %v383 = vadd.f32 %v327, %v382
  %v384 = vpop.f32.mrb[0].mxu0
  %v385 = vpop.f32.mrb[0].mxu0
  %386 = vdwg.mxu0
  %387 = vmatprep.subr.bf16.mxu0 %v305
  %388 = vmatpush1.bf16.msra.mxu0 %v304
  %389 = vmatprep.subr.bf16.mxu0 %v309
  %390 = vmatpush1.bf16.msra.mxu0 %v308
  %391 = vmatprep.subr.bf16.mxu0 %v313
  %392 = vmatpush1.bf16.msra.mxu0 %v312
  %393 = vmatprep.subr.bf16.mxu0 %v317
  %394 = vmatpush1.bf16.msra.mxu0 %v316
  %395 = vmatprep.subr.bf16.mxu0 %v344
  %396 = vmatpush1.bf16.msra.mxu0 %v341
  %397 = vmatprep.subr.bf16.mxu0 0
  %398 = vmatpush1.bf16.msra.mxu0 0
  %399 = vmatprep.subr.bf16.mxu0 0
  %400 = vmatpush1.bf16.msra.mxu0 0
  %401 = vmatprep.subr.bf16.mxu0 0
  %402 = vmatpush1.bf16.msra.mxu0 0
  %403 = vmatprep.subr.bf16.mxu0 0
  %404 = vmatpush1.bf16.msra.mxu0 0
  %405 = vmatprep.subr.bf16.mxu0 0
  %406 = vmatpush1.bf16.msra.mxu0 0
  %407 = vmatprep.subr.bf16.mxu0 0
  %408 = vmatpush1.bf16.msra.mxu0 0
  %409 = vmatprep.subr.bf16.mxu0 0
  %410 = vmatpush1.bf16.msra.mxu0 0
  %411 = vmatprep.subr.bf16.mxu0 0
  %412 = vmatpush1.bf16.msra.mxu0 0
  %413 = vmatprep.subr.bf16.mxu0 0
  %414 = vmatpush1.bf16.msra.mxu0 0
  %415 = vmatprep.subr.bf16.mxu0 0
  %416 = vmatpush1.bf16.msra.mxu0 0
  %417 = vmatprep.subr.bf16.mxu0 0
  %418 = vmatpush1.bf16.msra.mxu0 0
  %419 = vmatprep.mubr.bf16.mxu0 0
  %420 = vmatmul.mubr.bf16.gmra.mrb[0].mxu0 %v331
  %v421 = vpop.f32.mrb[0].mxu0
  %v422 = vadd.f32 %v327, %v421
  %v423 = vpop.f32.mrb[0].mxu0
  %v424 = vadd.f32 %v327, %v423
  %v425 = vpop.f32.mrb[0].mxu0
  %v426 = vpop.f32.mrb[0].mxu0
  %427 = vdwg.mxu0
  %v428 = vmax.f32 %v381, 0.0
  %v429 = vmax.f32 %v383, 0.0
  %v430 = vmax.f32 %v422, 0.0
  %v431 = vmax.f32 %v424, 0.0
  %432 = vrot.lane.b32.xlu0 %v428, 17
  %v433 = vpop.permute.xlu0 %432
  %434 = vrot.lane.b32.xlu0 %v429, 17
  %v435 = vpop.permute.xlu0 %434
  %436 = vrot.lane.b32.xlu0 %v430, 17
  %v437 = vpop.permute.xlu0 %436
  %438 = vrot.lane.b32.xlu0 %v431, 17
  %v439 = vpop.permute.xlu0 %438
  %v440 = vsel %vm46, %v437, %v439
  %v441 = vsel %vm46, %v435, %v437
  %v442 = vsel %vm46, %v433, %v435
  %v443 = vsel %vm46, %v439, %v433
  %v444 = vmul.f32 %v443, %v54
  %v445 = vmul.f32 %v442, %v58
  %v446 = vmul.f32 %v441, %v62
  %v447 = vmul.f32 %v440, %v66
  %448 = vrot.lane.b32.xlu0 %v428, 16
  %v449 = vpop.permute.xlu0 %448
  %450 = vrot.lane.b32.xlu0 %v429, 16
  %v451 = vpop.permute.xlu0 %450
  %452 = vrot.lane.b32.xlu0 %v430, 16
  %v453 = vpop.permute.xlu0 %452
  %454 = vrot.lane.b32.xlu0 %v431, 16
  %v455 = vpop.permute.xlu0 %454
  %v456 = vsel %vm79, %v453, %v455
  %v457 = vsel %vm79, %v451, %v453
  %v458 = vsel %vm79, %v449, %v451
  %v459 = vsel %vm79, %v455, %v449
  %v460 = vmul.f32 %v459, %v87
  %v461 = vmul.f32 %v458, %v91
  %v462 = vmul.f32 %v457, %v95
  %v463 = vmul.f32 %v456, %v99
  %464 = vrot.lane.b32.xlu0 %v428, 15
  %v465 = vpop.permute.xlu0 %464
  %466 = vrot.lane.b32.xlu0 %v429, 15
  %v467 = vpop.permute.xlu0 %466
  %468 = vrot.lane.b32.xlu0 %v430, 15
  %v469 = vpop.permute.xlu0 %468
  %470 = vrot.lane.b32.xlu0 %v431, 15
  %v471 = vpop.permute.xlu0 %470
  %v472 = vsel %vm112, %v469, %v471
  %v473 = vsel %vm112, %v467, %v469
  %v474 = vsel %vm112, %v465, %v467
  %v475 = vsel %vm112, %v471, %v465
  %v476 = vmul.f32 %v475, %v120
  %v477 = vmul.f32 %v474, %v124
  %v478 = vmul.f32 %v473, %v128
  %v479 = vmul.f32 %v472, %v132
  %480 = vrot.lane.b32.xlu0 %v428, 1
  %v481 = vpop.permute.xlu0 %480
  %482 = vrot.lane.b32.xlu0 %v429, 1
  %v483 = vpop.permute.xlu0 %482
  %484 = vrot.lane.b32.xlu0 %v430, 1
  %v485 = vpop.permute.xlu0 %484
  %486 = vrot.lane.b32.xlu0 %v431, 1
  %v487 = vpop.permute.xlu0 %486
  %v488 = vsel %vm145, %v485, %v487
  %v489 = vsel %vm145, %v483, %v485
  %v490 = vsel %vm145, %v481, %v483
  %v491 = vsel %vm145, %v487, %v481
  %v492 = vmul.f32 %v491, %v153
  %v493 = vmul.f32 %v490, %v157
  %v494 = vmul.f32 %v489, %v161
  %v495 = vmul.f32 %v488, %v165
  %496 = vrot.lane.b32.xlu0 %v428, 127
  %v497 = vpop.permute.xlu0 %496
  %498 = vrot.lane.b32.xlu0 %v429, 127
  %v499 = vpop.permute.xlu0 %498
  %500 = vrot.lane.b32.xlu0 %v430, 127
  %v501 = vpop.permute.xlu0 %500
  %502 = vrot.lane.b32.xlu0 %v431, 127
  %v503 = vpop.permute.xlu0 %502
  %v504 = vsel %vm178, %v501, %v503
  %v505 = vsel %vm178, %v499, %v501
  %v506 = vsel %vm178, %v497, %v499
  %v507 = vsel %vm178, %v503, %v497
  %v508 = vmul.f32 %v506, %v186
  %v509 = vmul.f32 %v505, %v190
  %v510 = vmul.f32 %v504, %v194
  %v511 = vmul.f32 %v507, %v198
  %512 = vrot.lane.b32.xlu0 %v428, 113
  %v513 = vpop.permute.xlu0 %512
  %514 = vrot.lane.b32.xlu0 %v429, 113
  %v515 = vpop.permute.xlu0 %514
  %516 = vrot.lane.b32.xlu0 %v430, 113
  %v517 = vpop.permute.xlu0 %516
  %518 = vrot.lane.b32.xlu0 %v431, 113
  %v519 = vpop.permute.xlu0 %518
  %v520 = vsel %vm211, %v517, %v519
  %v521 = vsel %vm211, %v515, %v517
  %v522 = vsel %vm211, %v513, %v515
  %v523 = vsel %vm211, %v519, %v513
  %v524 = vmul.f32 %v522, %v219
  %v525 = vmul.f32 %v521, %v223
  %v526 = vmul.f32 %v520, %v227
  %v527 = vmul.f32 %v523, %v231
  %528 = vrot.lane.b32.xlu0 %v428, 112
  %v529 = vpop.permute.xlu0 %528
  %530 = vrot.lane.b32.xlu0 %v429, 112
  %v531 = vpop.permute.xlu0 %530
  %532 = vrot.lane.b32.xlu0 %v430, 112
  %v533 = vpop.permute.xlu0 %532
  %534 = vrot.lane.b32.xlu0 %v431, 112
  %v535 = vpop.permute.xlu0 %534
  %v536 = vsel %vm244, %v533, %v535
  %v537 = vsel %vm244, %v531, %v533
  %v538 = vsel %vm244, %v529, %v531
  %v539 = vsel %vm244, %v535, %v529
  %v540 = vmul.f32 %v538, %v252
  %v541 = vmul.f32 %v537, %v256
  %v542 = vmul.f32 %v536, %v260
  %v543 = vmul.f32 %v539, %v264
  %544 = vrot.lane.b32.xlu0 %v428, 111
  %v545 = vpop.permute.xlu0 %544
  %546 = vrot.lane.b32.xlu0 %v429, 111
  %v547 = vpop.permute.xlu0 %546
  %548 = vrot.lane.b32.xlu0 %v430, 111
  %v549 = vpop.permute.xlu0 %548
  %550 = vrot.lane.b32.xlu0 %v431, 111
  %v551 = vpop.permute.xlu0 %550
  %v552 = vsel %vm277, %v549, %v551
  %v553 = vsel %vm277, %v547, %v549
  %v554 = vsel %vm277, %v545, %v547
  %v555 = vsel %vm277, %v551, %v545
  %v556 = vmul.f32 %v554, %v285
  %v557 = vmul.f32 %v553, %v289
  %v558 = vmul.f32 %v552, %v293
  %v559 = vmul.f32 %v555, %v297
  %v560 = vpack.c.bf16 %v460, %v444
  %v561 = vpack.c.bf16 %v461, %v445
  %v562 = vpack.c.bf16 %v462, %v446
  %v563 = vpack.c.bf16 %v463, %v447
  %v564 = vpack.c.bf16 %v492, %v476
  %v565 = vpack.c.bf16 %v493, %v477
  %v566 = vpack.c.bf16 %v494, %v478
  %v567 = vpack.c.bf16 %v495, %v479
  %v568 = vpack.c.bf16 %v508, %v428
  %v569 = vpack.c.bf16 %v509, %v429
  %v570 = vpack.c.bf16 %v510, %v430
  %v571 = vpack.c.bf16 %v511, %v431
  %v572 = vpack.c.bf16 %v540, %v524
  %v573 = vpack.c.bf16 %v541, %v525
  %v574 = vpack.c.bf16 %v542, %v526
  %v575 = vpack.c.bf16 %v543, %v527
  %v576 = vpack.c.bf16 %v556, %v556
  %v577 = vpack.c.bf16 %v557, %v557
  %v578 = vpack.c.bf16 %v558, %v558
  %v579 = vpack.c.bf16 %v559, %v559
  %v580 = vld [vmem:[%s4] sm:$0xf]
  %v581 = vld [vmem:[%s5] sm:$0xff]
  %583 = vset.pattern.permute.xlu0 0
  %584 = vperm.xlu0 %583, %v581
  %v585 = vpop.permute.xlu0 %584
  %v588 = vsel %vm329, %v580, 0
  %v591 = vsel %vm333, %v576, 0
  %v594 = vsel %vm333, %v577, 0
  %v597 = vsel %vm333, %v578, 0
  %v600 = vsel %vm333, %v579, 0
  %602 = vmatprep.subr.bf16.mxu0 %v561
  %603 = vmatpush1.bf16.msra.mxu0 %v560
  %604 = vmatprep.subr.bf16.mxu0 %v565
  %605 = vmatpush1.bf16.msra.mxu0 %v564
  %606 = vmatprep.subr.bf16.mxu0 %v569
  %607 = vmatpush1.bf16.msra.mxu0 %v568
  %608 = vmatprep.subr.bf16.mxu0 %v573
  %609 = vmatpush1.bf16.msra.mxu0 %v572
  %610 = vmatprep.subr.bf16.mxu0 %v594
  %611 = vmatpush1.bf16.msra.mxu0 %v591
  %612 = vmatprep.subr.bf16.mxu0 0
  %613 = vmatpush1.bf16.msra.mxu0 0
  %614 = vmatprep.subr.bf16.mxu0 0
  %615 = vmatpush1.bf16.msra.mxu0 0
  %616 = vmatprep.subr.bf16.mxu0 0
  %617 = vmatpush1.bf16.msra.mxu0 0
  %618 = vmatprep.subr.bf16.mxu0 0
  %619 = vmatpush1.bf16.msra.mxu0 0
  %620 = vmatprep.subr.bf16.mxu0 0
  %621 = vmatpush1.bf16.msra.mxu0 0
  %622 = vmatprep.subr.bf16.mxu0 0
  %623 = vmatpush1.bf16.msra.mxu0 0
  %624 = vmatprep.subr.bf16.mxu0 0
  %625 = vmatpush1.bf16.msra.mxu0 0
  %626 = vmatprep.subr.bf16.mxu0 0
  %627 = vmatpush1.bf16.msra.mxu0 0
  %628 = vmatprep.subr.bf16.mxu0 0
  %629 = vmatpush1.bf16.msra.mxu0 0
  %630 = vmatprep.subr.bf16.mxu0 0
  %631 = vmatpush1.bf16.msra.mxu0 0
  %632 = vmatprep.subr.bf16.mxu0 0
  %633 = vmatpush1.bf16.msra.mxu0 0
  %634 = vmatprep.mubr.bf16.mxu0 0
  %635 = vmatmul.mubr.bf16.gmra.mrb[0].mxu0 %v588
  %v636 = vpop.f32.mrb[0].mxu0
  %v637 = vadd.f32 %v585, %v636
  %v638 = vpop.f32.mrb[0].mxu0
  %v639 = vadd.f32 %v585, %v638
  %v640 = vpop.f32.mrb[0].mxu0
  %v641 = vpop.f32.mrb[0].mxu0
  %642 = vdwg.mxu0
  %643 = vmatprep.subr.bf16.mxu0 %v563
  %644 = vmatpush1.bf16.msra.mxu0 %v562
  %645 = vmatprep.subr.bf16.mxu0 %v567
  %646 = vmatpush1.bf16.msra.mxu0 %v566
  %647 = vmatprep.subr.bf16.mxu0 %v571
  %648 = vmatpush1.bf16.msra.mxu0 %v570
  %649 = vmatprep.subr.bf16.mxu0 %v575
  %650 = vmatpush1.bf16.msra.mxu0 %v574
  %651 = vmatprep.subr.bf16.mxu0 %v600
  %652 = vmatpush1.bf16.msra.mxu0 %v597
  %653 = vmatprep.subr.bf16.mxu0 0
  %654 = vmatpush1.bf16.msra.mxu0 0
  %655 = vmatprep.subr.bf16.mxu0 0
  %656 = vmatpush1.bf16.msra.mxu0 0
  %657 = vmatprep.subr.bf16.mxu0 0
  %658 = vmatpush1.bf16.msra.mxu0 0
  %659 = vmatprep.subr.bf16.mxu0 0
  %660 = vmatpush1.bf16.msra.mxu0 0
  %661 = vmatprep.subr.bf16.mxu0 0
  %662 = vmatpush1.bf16.msra.mxu0 0
  %663 = vmatprep.subr.bf16.mxu0 0
  %664 = vmatpush1.bf16.msra.mxu0 0
  %665 = vmatprep.subr.bf16.mxu0 0
  %666 = vmatpush1.bf16.msra.mxu0 0
  %667 = vmatprep.subr.bf16.mxu0 0
  %668 = vmatpush1.bf16.msra.mxu0 0
  %669 = vmatprep.subr.bf16.mxu0 0
  %670 = vmatpush1.bf16.msra.mxu0 0
  %671 = vmatprep.subr.bf16.mxu0 0
  %672 = vmatpush1.bf16.msra.mxu0 0
  %673 = vmatprep.subr.bf16.mxu0 0
  %674 = vmatpush1.bf16.msra.mxu0 0
  %675 = vmatprep.mubr.bf16.mxu0 0
  %676 = vmatmul.mubr.bf16.gmra.mrb[0].mxu0 %v588
  %v677 = vpop.f32.mrb[0].mxu0
  %v678 = vadd.f32 %v585, %v677
  %v679 = vpop.f32.mrb[0].mxu0
  %v680 = vadd.f32 %v585, %v679
  %v681 = vpop.f32.mrb[0].mxu0
  %v682 = vpop.f32.mrb[0].mxu0
  %683 = vdwg.mxu0
  %v684 = vadd.f32 %v637, %v32
  %v685 = vadd.f32 %v639, %v33
  %v686 = vadd.f32 %v678, %v34
  %v687 = vadd.f32 %v680, %v35
  %v688 = vmax.f32 %v684, 0.0
  %v689 = vmax.f32 %v685, 0.0
  %v690 = vmax.f32 %v686, 0.0
  %v691 = vmax.f32 %v687, 0.0
  %692 = vst [vmem:[%s6] sm:$0xff] %v688
  %693 = vst [vmem:[%s6 + $0x8] sm:$0xff] %v689
  %694 = vst [vmem:[%s6 + $0x10] sm:$0xff] %v690
  %695 = vst [vmem:[%s6 + $0x18] sm:$0xff] %v691
  // Predicated region
  $region26: #{basic_residual_block.1} parent=0 // pred_check
    _
  $region27: #{basic_residual_block.1} parent=0 // pred_check_branch
    %697 = sbr.rel (0) target = $region29
  $region28: #{basic_residual_block.1} parent=0 // pred_region
    _
  $region29: #{basic_residual_block.1} parent=0 // pred_fallthru
    _
  // Predicated region
  $region30: #{basic_residual_block.1} parent=0 // pred_check
    _
  $region31: #{basic_residual_block.1} parent=0 // pred_check_branch
    %699 = sbr.rel (0) target = $region33
  $region32: #{basic_residual_block.1} parent=0 // pred_region
    _
  $region33: #{basic_residual_block.1} parent=0 // pred_fallthru
    _

</llo_original>
